<compile_context>
chip_gen: v7x
topology: tpu7x:2x2x1
jax: 0.10.0
libtpu: 0.0.40
codegen_flags: <defaults>
</compile_context>

<pallas_src>
import functools

import numpy as np
import jax
import jax.numpy as jnp
from jax.experimental import pallas as pl
from jax.experimental.pallas import tpu as pltpu


# ---------------------------------------------------------------------------
# Static adaptive-pooling weight matrix (host side, numpy).
# ---------------------------------------------------------------------------
def _adaptive_pool_weights(L, O):
    """(L, O) f32 matrix s.t. x @ W == adaptive_avg_pool1d(x, O)."""
    l = np.arange(L, dtype=np.int64)[:, None]
    o = np.arange(O, dtype=np.int64)[None, :]
    start = (o * L) // O                   # floor(o*L/O)
    end = -(-((o + 1) * L) // O)           # ceil((o+1)*L/O)
    count = (end - start).astype(np.float32)
    return np.where((l >= start) & (l < end), 1.0 / count, 0.0).astype(np.float32)


def _pick_batch_tile(n, block_b):
    """Batch tile: multiple of 8 (or full n), <= block_b, >= 2 tiles when n >= 16."""
    if n < 16:
        return n
    blk = max(8, (block_b // 8) * 8)
    two_tile = ((n + 15) // 16) * 8        # largest mult-of-8 tile still giving >= 2 tiles
    return min(blk, two_tile)


def _vmem_limit(footprint_bytes):
    return int(min(100 * 2**20, max(32 * 2**20, int(footprint_bytes * 1.3) + (4 << 20))))


# ---------------------------------------------------------------------------
# Kernels
# ---------------------------------------------------------------------------
def _pool_matmul_resident_kernel(x_ref, w_ref, o_ref, *, compute_dtype):
    """Regime A: grid = (batch tiles,).  W is fully VMEM-resident (constant block index)."""
    x = x_ref[...].astype(compute_dtype)
    o_ref[...] = jnp.dot(x, w_ref[...], preferred_element_type=jnp.float32)


def _pool_matmul_ktiled_kernel(x_ref, w_ref, o_ref, *, rem, compute_dtype):
    """Regime B: grid = (batch tiles, K tiles).  Accumulate directly into resident o_ref."""
    k = pl.program_id(1)
    nk = pl.num_programs(1)

    @pl.when(k == 0)
    def _():
        o_ref[...] = jnp.zeros_like(o_ref)

    def accum(x):
        o_ref[...] += jnp.dot(x, w_ref[...], preferred_element_type=jnp.float32)

    if rem:  # static: last K tile is partial -> mask garbage columns in-kernel (no HBM pad)
        @pl.when(k < nk - 1)
        def _():
            accum(x_ref[...].astype(compute_dtype))

        @pl.when(k == nk - 1)
        def _():
            x = x_ref[...].astype(compute_dtype)
            col = jax.lax.broadcasted_iota(jnp.int32, x.shape, 1)
            accum(jnp.where(col < rem, x, jnp.zeros_like(x)))
    else:
        accum(x_ref[...].astype(compute_dtype))


# ---------------------------------------------------------------------------
# Wrapper
# ---------------------------------------------------------------------------
def aggregator_forward(features, target_dim, *, block_b=256, block_k=2048,
                       compute_dtype=jnp.bfloat16, force_k_tiling=False,
                       vmem_budget_bytes=40 * 2**20):
    """Pallas equivalent of Aggregator.forward.  Returns (N, target_dim) float32."""
    N = features.shape[0]
    O = int(target_dim)

    x = jnp.reshape(features, (N, -1))                      # free (row-major) reshape
    if x.dtype not in (jnp.float32, jnp.bfloat16, jnp.float16):
        x = x.astype(jnp.float32)
    L = x.shape[1]
    x_isz = jnp.dtype(x.dtype).itemsize
    c_isz = jnp.dtype(compute_dtype).itemsize

    w_np = _adaptive_pool_weights(L, O)

    # ------------------ Regime A: W fully resident, no K tiling ------------------
    tb_a = _pick_batch_tile(N, block_b)
    fp_a = 2 * tb_a * L * x_isz + 2 * tb_a * O * 4 + 2 * L * O * c_isz
    if not force_k_tiling and fp_a <= vmem_budget_bytes:
        W = jnp.asarray(w_np, dtype=compute_dtype)
        cost = pl.CostEstimate(
            flops=2 * N * L * O, transcendentals=0,
            bytes_accessed=N * L * x_isz + L * O * c_isz + N * O * 4)
        kernel = functools.partial(_pool_matmul_resident_kernel,
                                   compute_dtype=compute_dtype)
        return pl.pallas_call(
            kernel,
            out_shape=jax.ShapeDtypeStruct((N, O), jnp.float32),
            grid_spec=pltpu.PrefetchScalarGridSpec(
                num_scalar_prefetch=0,
                grid=(pl.cdiv(N, tb_a),),
                in_specs=[
                    pl.BlockSpec((tb_a, L), lambda i: (i, 0)),   # x batch tile
                    pl.BlockSpec((L, O), lambda i: (0, 0)),      # W: fetched once, resident
                ],
                out_specs=pl.BlockSpec((tb_a, O), lambda i: (i, 0)),
            ),
            compiler_params=pltpu.CompilerParams(
                dimension_semantics=("parallel",),
                vmem_limit_bytes=_vmem_limit(fp_a)),
            cost_estimate=cost,
        )(x, W)

    # ------------------ Regime B: K tiling (very large L, or forced) ------------------
    tb = _pick_batch_tile(N, max(block_b, 512))              # big TB -> fewer W re-reads
    if L >= 128:
        tk = max(128, (min(block_k, L) // 128) * 128)
    else:
        tk = L
    nk = pl.cdiv(L, tk)
    L_pad = nk * tk
    rem = L - (nk - 1) * tk
    rem = 0 if rem == tk else rem

    if L_pad != L:                                            # pad only tiny W, never x
        w_np = np.pad(w_np, ((0, L_pad - L), (0, 0)))
    W = jnp.asarray(w_np, dtype=compute_dtype)

    nb = pl.cdiv(N, tb)
    fp_b = 2 * tb * tk * x_isz + 2 * tk * O * c_isz + 2 * tb * O * 4
    cost = pl.CostEstimate(
        flops=2 * N * L_pad * O, transcendentals=0,
        bytes_accessed=N * L * x_isz + nb * L_pad * O * c_isz + N * O * 4)
    kernel = functools.partial(_pool_matmul_ktiled_kernel,
                               rem=rem, compute_dtype=compute_dtype)
    return pl.pallas_call(
        kernel,
        out_shape=jax.ShapeDtypeStruct((N, O), jnp.float32),
        grid_spec=pltpu.PrefetchScalarGridSpec(
            num_scalar_prefetch=0,
            grid=(nb, nk),
            in_specs=[
                pl.BlockSpec((tb, tk), lambda i, k: (i, k)),   # x tile
                pl.BlockSpec((tk, O), lambda i, k: (k, 0)),    # W K-tile
            ],
            out_specs=pl.BlockSpec((tb, O), lambda i, k: (i, 0)),  # resident accumulator
        ),
        compiler_params=pltpu.CompilerParams(
            dimension_semantics=("parallel", "arbitrary"),
            vmem_limit_bytes=_vmem_limit(fp_b)),
        cost_estimate=cost,
    )(x, W)


# ---------------------------------------------------------------------------
# Pure-JAX reference (replicates F.adaptive_avg_pool1d semantics in f32)
# ---------------------------------------------------------------------------
def _reference_forward(features, target_dim):
    N = features.shape[0]
    x = jnp.reshape(features, (N, -1)).astype(jnp.float32)
    L = x.shape[1]
    cols = []
    for o in range(target_dim):
        s = (o * L) // target_dim
        e = -(-((o + 1) * L) // target_dim)   # ceil
        cols.append(jnp.mean(x[:, s:e], axis=1))
    return jnp.stack(cols, axis=1)


if __name__ == "__main__":
    key = jax.random.PRNGKey(0)
    # Small Aggregator-like shape: N features of (C, H, W) = (8, 6, 6) -> L = 288,
    # pooled to target_dim = 128 (uneven bins of size 2 and 3).
    N, C, H, Wd = 24, 8, 6, 6
    target_dim = 128
    feats = jax.random.normal(key, (N, C, H, Wd), dtype=jnp.float32)

    ref = _reference_forward(feats, target_dim)

    # 1) f32 compute, regime A (resident W, 2 batch tiles) -> exact check.
    out_f32 = jax.block_until_ready(
        aggregator_forward(feats, target_dim, compute_dtype=jnp.float32))
    assert out_f32.shape == (N, target_dim), out_f32.shape
    assert jnp.allclose(out_f32, ref, atol=1e-5, rtol=1e-5), \
        float(jnp.max(jnp.abs(out_f32 - ref)))

    # 2) Default bf16 compute (f32 accumulation), regime A -> relaxed tolerance.
    out_bf16 = jax.block_until_ready(aggregator_forward(feats, target_dim))
    assert out_bf16.shape == (N, target_dim), out_bf16.shape
    assert jnp.allclose(out_bf16, ref, atol=5e-2, rtol=5e-2), \
        float(jnp.max(jnp.abs(out_bf16 - ref)))

    # 3) Regime B (K-tiled, partial last K tile masked in-kernel), f32 -> exact check.
    out_kt = jax.block_until_ready(
        aggregator_forward(feats, target_dim, compute_dtype=jnp.float32,
                           block_k=128, force_k_tiling=True))
    assert out_kt.shape == (N, target_dim), out_kt.shape
    assert jnp.allclose(out_kt, ref, atol=1e-5, rtol=1e-5), \
        float(jnp.max(jnp.abs(out_kt - ref)))

    print("KERNEL_OK")
</pallas_src>

<mosaic_0001>
module attributes {stable_mosaic.version = 11 : i64} {
  func.func @_pool_matmul_resident_kernel(%arg0: i32, %arg1: memref<16x288xf32, #tpu.memory_space<vmem>>, %arg2: memref<288x128xf32, #tpu.memory_space<vmem>>, %arg3: memref<16x128xf32, #tpu.memory_space<vmem>>) attributes {dimension_semantics = [#tpu.dimension_semantics<parallel>], iteration_bounds = array<i64: 2>, scalar_prefetch = 0 : i64, scratch_operands = 0 : i64, tpu.core_type = #tpu.core_type<tc>, window_params = [{transform_indices = @transform_0, window_bounds = array<i64: 16, 288>}, {pipeline_mode = #tpu.pipeline_mode<synchronous>, transform_indices = @transform_1, window_bounds = array<i64: 288, 128>}, {transform_indices = @transform_2, window_bounds = array<i64: 16, 128>}]} {
    %c0 = arith.constant 0 : index
    %c0_0 = arith.constant 0 : index
    %0 = vector.load %arg1[%c0, %c0_0] : memref<16x288xf32, #tpu.memory_space<vmem>>, vector<16x288xf32>
    %c0_1 = arith.constant 0 : index
    %c0_2 = arith.constant 0 : index
    %1 = vector.load %arg2[%c0_1, %c0_2] : memref<288x128xf32, #tpu.memory_space<vmem>>, vector<288x128xf32>
    %cst = arith.constant dense<0.000000e+00> : vector<16x128xf32>
    %2 = tpu.matmul %0, %1, %cst {dimension_numbers = #tpu.dot_dimension_numbers<[1], [0], [0], [1], [0, 0, 1, 1], [], []>} : vector<16x288xf32>, vector<288x128xf32>, vector<16x128xf32> -> vector<16x128xf32>
    %c0_3 = arith.constant 0 : index
    %c0_4 = arith.constant 0 : index
    %3 = vector.load %arg3[%c0_3, %c0_4] : memref<16x128xf32, #tpu.memory_space<vmem>>, vector<16x128xf32>
    tpu.vector_store %arg3[%c0_3, %c0_4], %2 {strides = array<i32>} : memref<16x128xf32, #tpu.memory_space<vmem>>, vector<16x128xf32>,
    return
  }
  func.func @transform_0(%arg0: i32) -> (i32, i32) {
    %c0_i32 = arith.constant 0 : i32
    %c0_i32_0 = arith.constant 0 : i32
    return %arg0, %c0_i32 : i32, i32
  }
  func.func @transform_1(%arg0: i32) -> (i32, i32) {
    %c0_i32 = arith.constant 0 : i32
    %c0_i32_0 = arith.constant 0 : i32
    %c0_i32_1 = arith.constant 0 : i32
    return %c0_i32, %c0_i32_0 : i32, i32
  }
  func.func @transform_2(%arg0: i32) -> (i32, i32) {
    %c0_i32 = arith.constant 0 : i32
    %c0_i32_0 = arith.constant 0 : i32
    return %arg0, %c0_i32 : i32, i32
  }
}

</mosaic_0001>

<llo_original>
// kernel: tpu_custom_call.1
$region0: #{tpu_custom_call.1}
  #allocation0 [shape = 'u32[]', space=smem, size = 0x4, offset = 0x4, fixed_abs, tag = 'smem constant byte address 0x4 - core index']
  #allocation1 [shape = 'u32[144,128]{1,0:T(1,128)}', space=vmem, size = 0x12000, scoped, tag = 'internal scratch']
  %s0 = inlined_call_operand.hbm [shape: f32[24,288], index: 0, kind: input, shape index: {}]
  %s1 = inlined_call_operand.hbm [shape: f32[288,128], index: 1, kind: input, shape index: {}]
  %s2 = inlined_call_operand.hbm [shape: f32[24,128], index: 2, kind: output, shape index: {}]
  %s3 = sld [smem:[#allocation0]]
  $region49: #{tpu_custom_call.1} parent=0
    _
  %s5 = ssub.s32 1, %s3
  %s6 = scalar_select 0, %s5, %s3
  $region1: #{tpu_custom_call.1} parent=0
    #allocation2 [shape = 'u8[49152]{0}', space=vmem, size = 0xc000, scoped, tag = 'input window, operand 0']
    #allocation3 [shape = 's32[2]{0}', space=sflag, size = 0x8, scoped, tag = 'scoped memory for tpu_custom_call.1']
    #allocation4 [shape = 's32[2]{0}', space=sflag, size = 0x8, scoped, tag = 'scoped memory for tpu_custom_call.1']
    #allocation5 [shape = 'u8[147456]{0}', space=vmem, size = 0x24000, scoped, tag = 'input window, operand 1, single buffered']
    #allocation6 [shape = 's32[1]{0}', space=sflag, size = 0x4, scoped, tag = 'scoped memory for tpu_custom_call.1']
    #allocation7 [shape = 'u8[16384]{0}', space=vmem, size = 0x4000, scoped, tag = 'output window, operand 0']
    %7 = vsyncpa [#allocation3], 0
    %s8 = scalar_lea.sflag [#allocation3], 1
    %9 = vsyncpa %s8, 0
    %10 = vsyncpa [#allocation6], 0
    %11 = vsyncpa [#allocation4], 0
    %s12 = scalar_lea.sflag [#allocation4], 1
    %13 = vsyncpa %s12, 0
    loop: start=0, step=1, limit=4
    $region2: #{tpu_custom_call.1} parent=1 // loop_pre_header
      _
    $region3: #{tpu_custom_call.1} parent=1 // loop_header
      %s15 = sphi 0, %s19
      %p16 = scmp.ge.s32.totalorder %s15, 4
      %s25 = sphi 0, %s27
      %s28 = sphi 0, %s25
      %s29 = sphi 0, %s28
      %s45 = sphi 0, %s29
      %s49 = sphi 0, %s49
      %s51 = sphi 0, %s49
      %s52 = sphi 0, %s51
      %s66 = sphi 0, %s52
      %s72 = sphi 0, %s74
      %s75 = sphi 0, %s72
      %s76 = sphi 0, %s75
      %s92 = sphi 0, %s76
    $region4: #{tpu_custom_call.1} parent=1 // loop_header_branch
      %18 = sbr.rel (%p16) target = $region8
    $region5: #{tpu_custom_call.1} parent=1 // loop_body
      %s20 = ssub.s32 %s15, 1
      %s21 = ssub.s32 %s15, 2
      %s22 = sadd.s32 %s15, 1
      %s23 = ssub.s32 %s15, %s22
      %p24 = scmp.eq.s32.totalorder %s23, 0
      %s26 = sadd.s32 %s25, 1
      %s27 = scalar_select %p24, %s25, %s26
      %p30 = pneg %p24
      %p31 = scmp.eq.s32.totalorder %s15, 1
      %p32 = por %p30, %p31
      %p33 = scmp.ne.s32.totalorder %s25, %s28
      %p34 = scmp.eq.s32.totalorder %s15, 0
      %p35 = por %p33, %p34
      %p36 = scmp.ne.s32.totalorder %s25, %s28
      %p37 = scmp.eq.s32.totalorder %s20, 1
      %p38 = por %p36, %p37
      %p39 = scmp.ne.s32.totalorder %s28, %s29
      %p40 = scmp.eq.s32.totalorder %s20, 0
      %p41 = por %p39, %p40
      %p42 = scmp.ne.s32.totalorder %s28, %s29
      %p43 = scmp.eq.s32.totalorder %s21, 1
      %p44 = por %p42, %p43
      %p46 = scmp.ne.s32.totalorder %s29, %s45
      %p47 = scmp.eq.s32.totalorder %s21, 0
      %p48 = por %p46, %p47
      %s50 = sadd.s32 %s49, 1
      %p53 = scmp.eq.s32.totalorder %s15, 1
      %p54 = scmp.ne.s32.totalorder %s49, %s51
      %p55 = scmp.eq.s32.totalorder %s15, 0
      %p56 = por %p54, %p55
      %p57 = scmp.ne.s32.totalorder %s49, %s51
      %p58 = scmp.eq.s32.totalorder %s20, 1
      %p59 = por %p57, %p58
      %p60 = scmp.ne.s32.totalorder %s51, %s52
      %p61 = scmp.eq.s32.totalorder %s20, 0
      %p62 = por %p60, %p61
      %p63 = scmp.ne.s32.totalorder %s51, %s52
      %p64 = scmp.eq.s32.totalorder %s21, 1
      %p65 = por %p63, %p64
      %p67 = scmp.ne.s32.totalorder %s52, %s66
      %p68 = scmp.eq.s32.totalorder %s21, 0
      %p69 = por %p67, %p68
      %s70 = ssub.s32 %s15, %s22
      %p71 = scmp.eq.s32.totalorder %s70, 0
      %s73 = sadd.s32 %s72, 1
      %s74 = scalar_select %p71, %s72, %s73
      %p77 = pneg %p71
      %p78 = scmp.eq.s32.totalorder %s15, 1
      %p79 = por %p77, %p78
      %p80 = scmp.ne.s32.totalorder %s72, %s75
      %p81 = scmp.eq.s32.totalorder %s15, 0
      %p82 = por %p80, %p81
      %p83 = scmp.ne.s32.totalorder %s72, %s75
      %p84 = scmp.eq.s32.totalorder %s20, 1
      %p85 = por %p83, %p84
      %p86 = scmp.ne.s32.totalorder %s75, %s76
      %p87 = scmp.eq.s32.totalorder %s20, 0
      %p88 = por %p86, %p87
      %p89 = scmp.ne.s32.totalorder %s75, %s76
      %p90 = scmp.eq.s32.totalorder %s21, 1
      %p91 = por %p89, %p90
      %p93 = scmp.ne.s32.totalorder %s76, %s92
      %p94 = scmp.eq.s32.totalorder %s21, 0
      %p95 = por %p93, %p94
      %p96 = scmp.le.s32.totalorder 1, %s15
      %p97 = scmp.lt.s32.totalorder %s15, 3
      %p98 = pnand %p96, %p97
      %p99 = pneg %p98
      // Predicated region
      $region9: #{tpu_custom_call.1} parent=5 // pred_check
        _
      $region10: #{tpu_custom_call.1} parent=5 // pred_check_branch
        %101 = sbr.rel (%p98) target = $region12
      $region11: #{tpu_custom_call.1} parent=5 // pred_region
        %s102 = ssub.s32 %s15, 1
        // Predicated region
        $region13: #{tpu_custom_call.1} parent=11 // pred_check
          %p103 = pneg %p62
        $region14: #{tpu_custom_call.1} parent=11 // pred_check_branch
          %105 = sbr.rel (%p103) target = $region16
        $region15: #{tpu_custom_call.1} parent=11 // pred_region
          %s107 = ssub.s32 4608, 4608
          %108 = vsyncadd [#allocation6], %s107
          %s109 = sshll.u32 [#allocation5], 4
          %s110 = int_to_ptr.vmem [resolvable:$true] %s109
          %115 = dma.hbm_to_vmem [thread:$0]  %s1, 4608, %s110, [#allocation6], 128, 128, 8
        $region16: #{tpu_custom_call.1} parent=11 // pred_fallthru
          _
      $region12: #{tpu_custom_call.1} parent=5 // pred_fallthru
        _
      %p116 = scmp.lt.s32.totalorder %s15, 2
      // Predicated region
      $region17: #{tpu_custom_call.1} parent=5 // pred_check
        %p117 = pneg %p116
      $region18: #{tpu_custom_call.1} parent=5 // pred_check_branch
        %119 = sbr.rel (%p117) target = $region20
      $region19: #{tpu_custom_call.1} parent=5 // pred_region
        // Predicated region
        $region21: #{tpu_custom_call.1} parent=19 // pred_check
          %p120 = pneg %p35
        $region22: #{tpu_custom_call.1} parent=19 // pred_check_branch
          %122 = sbr.rel (%p120) target = $region24
        $region23: #{tpu_custom_call.1} parent=19 // pred_region
          %s123 = sand.u32 %s25, 1
          %s124 = scalar_lea.sflag [#allocation3], %s123
          %s125 = sand.u32 %s25, 1
          %s126 = smul.addr %s125, 48
          %s127 = scalar_lea.vmem [#allocation2], %s126
          %s128 = smul.u32 2, %s15
          %s129 = ssub.s32 3, %s128
          %p130 = scmp.lt.s32.totalorder %s129, 2
          %s131 = scalar_select %p130, %s129, 2
          %s132 = smul.u32 128, %s131
          %s133 = smul.u32 %s132, 3
          %s135 = ssub.s32 768, %s133
          %136 = vsyncadd %s124, %s135
          %p137 = scmp.ne.s32.totalorder 0, %s133
          %s138 = smul.addr %s128, 3
          %s139 = smul.addr %s138, 128
          %s140 = scalar_lea.hbm %s0, %s139
          %s141 = smul.u32 24, %s131
          %s142 = sshll.u32 %s127, 4
          %s143 = int_to_ptr.vmem [resolvable:$true] %s142
          %s144 = sshll.u32 %s141, 4
          %148 = dma.hbm_to_vmem [thread:$0]  (%p137), %s140, %s144, %s143, %s124, 384, 384, 24
        $region24: #{tpu_custom_call.1} parent=19 // pred_fallthru
          _
      $region20: #{tpu_custom_call.1} parent=5 // pred_fallthru
        _
      %p149 = scmp.le.s32.totalorder 1, %s15
      %p150 = scmp.lt.s32.totalorder %s15, 3
      %p151 = pnand %p149, %p150
      %p152 = pneg %p151
      // Predicated region
      $region25: #{tpu_custom_call.1} parent=5 // pred_check
        _
      $region26: #{tpu_custom_call.1} parent=5 // pred_check_branch
        %154 = sbr.rel (%p151) target = $region28
      $region27: #{tpu_custom_call.1} parent=5 // pred_region
        %s155 = ssub.s32 %s15, 1
        %s156 = sand.u32 %s28, 1
        %s157 = scalar_lea.sflag [#allocation3], %s156
        %s158 = sand.u32 %s28, 1
        %s159 = smul.addr %s158, 48
        %s160 = scalar_lea.vmem [#allocation2], %s159
        // Predicated region
        $region29: #{tpu_custom_call.1} parent=27 // pred_check
          %p161 = pneg %p41
        $region30: #{tpu_custom_call.1} parent=27 // pred_check_branch
          %163 = sbr.rel (%p161) target = $region32
        $region31: #{tpu_custom_call.1} parent=27 // pred_region
          %164 = dma.done %s157, 768
        $region32: #{tpu_custom_call.1} parent=27 // pred_fallthru
          _
        // Predicated region
        $region33: #{tpu_custom_call.1} parent=27 // pred_check
          %p165 = pneg %p62
        $region34: #{tpu_custom_call.1} parent=27 // pred_check_branch
          %167 = sbr.rel (%p165) target = $region36
        $region35: #{tpu_custom_call.1} parent=27 // pred_region
          %168 = dma.done [#allocation6], 4608
        $region36: #{tpu_custom_call.1} parent=27 // pred_fallthru
          _
        %s169 = sand.u32 %s28, 1
        %s170 = scalar_lea.sflag [#allocation3], %s169
        %s171 = sand.u32 %s28, 1
        %s172 = smul.addr %s171, 48
        %s173 = scalar_lea.vmem [#allocation2], %s172
        %p174 = pneg %p41
        %p175 = pneg %p38
        %p176 = pneg %p62
        %p177 = pneg %p59
        %p178 = pneg %p88
        %p179 = pneg %p85
        %s180 = sand.u32 %s75, 1
        %s181 = scalar_lea.sflag [#allocation4], %s180
        %s182 = sand.u32 %s75, 1
        %s183 = smul.addr %s182, 16
        %s184 = scalar_lea.vmem [#allocation7], %s183
        %s185 = smul.u32 2, %s20
        %s186 = ssub.s32 3, %s185
        %p187 = scmp.lt.s32.totalorder %s186, 2
        %s188 = scalar_select %p187, %s186, 2
        %s189 = smul.u32 128, %s188
        %s190 = smul.u32 %s189, 3
        %s191 = smul.u32 2, %s20
        %s192 = ssub.s32 3, %s191
        %p193 = scmp.lt.s32.totalorder %s192, 2
        %s194 = scalar_select %p193, %s192, 2
        %s195 = smul.u32 128, %s194
        %v196 = vld [vmem:[%s160] sm:$0xff]
        %v197 = vld [vmem:[%s160 + $0x8] sm:$0xff]
        %v198 = vld [vmem:[%s160 + $0x10] sm:$0xff]
        %v199 = vld [vmem:[%s160 + $0x18] sm:$0xff]
        %v200 = vld [vmem:[%s160 + $0x20] sm:$0xff]
        %v201 = vld [vmem:[%s160 + $0x28] sm:$0xff]
        %v202 = vld [vmem:[#allocation5] sm:$0xff]
        %v203 = vld [vmem:[#allocation5 + $0x8] sm:$0xff]
        %v204 = vld [vmem:[#allocation5 + $0x10] sm:$0xff]
        %v205 = vld [vmem:[#allocation5 + $0x18] sm:$0xff]
        %v206 = vld [vmem:[#allocation5 + $0x20] sm:$0xff]
        %v207 = vld [vmem:[#allocation5 + $0x28] sm:$0xff]
        %v208 = vld [vmem:[#allocation5 + $0x30] sm:$0xff]
        %v209 = vld [vmem:[#allocation5 + $0x38] sm:$0xff]
        %v210 = vld [vmem:[#allocation5 + $0x40] sm:$0xff]
        %v211 = vld [vmem:[#allocation5 + $0x48] sm:$0xff]
        %v212 = vld [vmem:[#allocation5 + $0x50] sm:$0xff]
        %v213 = vld [vmem:[#allocation5 + $0x58] sm:$0xff]
        %v214 = vld [vmem:[#allocation5 + $0x60] sm:$0xff]
        %v215 = vld [vmem:[#allocation5 + $0x68] sm:$0xff]
        %v216 = vld [vmem:[#allocation5 + $0x70] sm:$0xff]
        %v217 = vld [vmem:[#allocation5 + $0x78] sm:$0xff]
        %v218 = vld [vmem:[#allocation5 + $0x80] sm:$0xff]
        %v219 = vld [vmem:[#allocation5 + $0x88] sm:$0xff]
        %v220 = vld [vmem:[#allocation5 + $0x90] sm:$0xff]
        %v221 = vld [vmem:[#allocation5 + $0x98] sm:$0xff]
        %v222 = vld [vmem:[#allocation5 + $0xa0] sm:$0xff]
        %v223 = vld [vmem:[#allocation5 + $0xa8] sm:$0xff]
        %v224 = vld [vmem:[#allocation5 + $0xb0] sm:$0xff]
        %v225 = vld [vmem:[#allocation5 + $0xb8] sm:$0xff]
        %v226 = vld [vmem:[#allocation5 + $0xc0] sm:$0xff]
        %v227 = vld [vmem:[#allocation5 + $0xc8] sm:$0xff]
        %v228 = vld [vmem:[#allocation5 + $0xd0] sm:$0xff]
        %v229 = vld [vmem:[#allocation5 + $0xd8] sm:$0xff]
        %v230 = vld [vmem:[#allocation5 + $0xe0] sm:$0xff]
        %v231 = vld [vmem:[#allocation5 + $0xe8] sm:$0xff]
        %v232 = vld [vmem:[#allocation5 + $0xf0] sm:$0xff]
        %v233 = vld [vmem:[#allocation5 + $0xf8] sm:$0xff]
        %v234 = vld [vmem:[#allocation5 + $0x100] sm:$0xff]
        %v235 = vld [vmem:[#allocation5 + $0x108] sm:$0xff]
        %v236 = vld [vmem:[#allocation5 + $0x110] sm:$0xff]
        %v237 = vld [vmem:[#allocation5 + $0x118] sm:$0xff]
        %vm238 = vcmask 261120
        %v240 = vsel %vm238, %v198, 0
        %v243 = vsel %vm238, %v201, 0
        %245 = vmatprep.subr.mxu0 0.0
        %246 = vmatpush1.msra.mxu0 %v202
        %247 = vmatprep.subr.mxu0 0.0
        %248 = vmatpush1.msra.mxu0 %v203
        %249 = vmatprep.subr.mxu0 0.0
        %250 = vmatpush1.msra.mxu0 %v204
        %251 = vmatprep.subr.mxu0 0.0
        %252 = vmatpush1.msra.mxu0 %v205
        %253 = vmatprep.subr.mxu0 0.0
        %254 = vmatpush1.msra.mxu0 %v206
        %255 = vmatprep.subr.mxu0 0.0
        %256 = vmatpush1.msra.mxu0 %v207
        %257 = vmatprep.subr.mxu0 0.0
        %258 = vmatpush1.msra.mxu0 %v208
        %259 = vmatprep.subr.mxu0 0.0
        %260 = vmatpush1.msra.mxu0 %v209
        %261 = vmatprep.subr.mxu0 0.0
        %262 = vmatpush1.msra.mxu0 %v210
        %263 = vmatprep.subr.mxu0 0.0
        %264 = vmatpush1.msra.mxu0 %v211
        %265 = vmatprep.subr.mxu0 0.0
        %266 = vmatpush1.msra.mxu0 %v212
        %267 = vmatprep.subr.mxu0 0.0
        %268 = vmatpush1.msra.mxu0 %v213
        %269 = vmatprep.subr.mxu0 0.0
        %270 = vmatpush1.msra.mxu0 %v214
        %271 = vmatprep.subr.mxu0 0.0
        %272 = vmatpush1.msra.mxu0 %v215
        %273 = vmatprep.subr.mxu0 0.0
        %274 = vmatpush1.msra.mxu0 %v216
        %275 = vmatprep.subr.mxu0 0.0
        %276 = vmatpush1.msra.mxu0 %v217
        %277 = vmatprep.subr.mxu0 0.0
        %278 = vmatpush1.msra.mxu0 %v218
        %279 = vmatprep.subr.mxu0 0.0
        %280 = vmatpush1.msra.mxu0 %v219
        %281 = vmatprep.subr.mxu0 0.0
        %282 = vmatpush1.msra.mxu0 %v220
        %283 = vmatprep.subr.mxu0 0.0
        %284 = vmatpush1.msra.mxu0 %v221
        %285 = vmatprep.subr.mxu0 0.0
        %286 = vmatpush1.msra.mxu0 %v222
        %287 = vmatprep.subr.mxu0 0.0
        %288 = vmatpush1.msra.mxu0 %v223
        %289 = vmatprep.subr.mxu0 0.0
        %290 = vmatpush1.msra.mxu0 %v224
        %291 = vmatprep.subr.mxu0 0.0
        %292 = vmatpush1.msra.mxu0 %v225
        %293 = vmatprep.subr.mxu0 0.0
        %294 = vmatpush1.msra.mxu0 %v226
        %295 = vmatprep.subr.mxu0 0.0
        %296 = vmatpush1.msra.mxu0 %v227
        %297 = vmatprep.subr.mxu0 0.0
        %298 = vmatpush1.msra.mxu0 %v228
        %299 = vmatprep.subr.mxu0 0.0
        %300 = vmatpush1.msra.mxu0 %v229
        %301 = vmatprep.subr.mxu0 0.0
        %302 = vmatpush1.msra.mxu0 %v230
        %303 = vmatprep.subr.mxu0 0.0
        %304 = vmatpush1.msra.mxu0 %v231
        %305 = vmatprep.subr.mxu0 0.0
        %306 = vmatpush1.msra.mxu0 %v232
        %307 = vmatprep.subr.mxu0 0.0
        %308 = vmatpush1.msra.mxu0 %v233
        %309 = vmatprep.mubr.f32.mxu0 %v197
        %310 = vmatmul.mubr.f32.gmra.mrb[0].mxu0 %v196
        %v311 = vpop.f32.mrb[0].mxu0
        %v312 = vadd.f32 0.0, %v311
        %v313 = vpop.f32.mrb[0].mxu0
        %314 = vmatprep.mubr.f32.mxu0 %v200
        %315 = vmatmul.mubr.f32.gmra.mrb[0].mxu0 %v199
        %v316 = vpop.f32.mrb[0].mxu0
        %v317 = vadd.f32 0.0, %v316
        %v318 = vpop.f32.mrb[0].mxu0
        %319 = vdwg.mxu0
        %320 = vmatprep.subr.mxu0 0.0
        %321 = vmatpush1.msra.mxu0 %v234
        %322 = vmatprep.subr.mxu0 0.0
        %323 = vmatpush1.msra.mxu0 %v235
        %324 = vmatprep.subr.mxu0 0.0
        %325 = vmatpush1.msra.mxu0 %v236
        %326 = vmatprep.subr.mxu0 0.0
        %327 = vmatpush1.msra.mxu0 %v237
        %328 = vmatprep.subr.mxu0 0.0
        %329 = vmatpush1.msra.mxu0 0.0
        %330 = vmatprep.subr.mxu0 0.0
        %331 = vmatpush1.msra.mxu0 0.0
        %332 = vmatprep.subr.mxu0 0.0
        %333 = vmatpush1.msra.mxu0 0.0
        %334 = vmatprep.subr.mxu0 0.0
        %335 = vmatpush1.msra.mxu0 0.0
        %336 = vmatprep.subr.mxu0 0.0
        %337 = vmatpush1.msra.mxu0 0.0
        %338 = vmatprep.subr.mxu0 0.0
        %339 = vmatpush1.msra.mxu0 0.0
        %340 = vmatprep.subr.mxu0 0.0
        %341 = vmatpush1.msra.mxu0 0.0
        %342 = vmatprep.subr.mxu0 0.0
        %343 = vmatpush1.msra.mxu0 0.0
        %344 = vmatprep.subr.mxu0 0.0
        %345 = vmatpush1.msra.mxu0 0.0
        %346 = vmatprep.subr.mxu0 0.0
        %347 = vmatpush1.msra.mxu0 0.0
        %348 = vmatprep.subr.mxu0 0.0
        %349 = vmatpush1.msra.mxu0 0.0
        %350 = vmatprep.subr.mxu0 0.0
        %351 = vmatpush1.msra.mxu0 0.0
        %352 = vmatprep.subr.mxu0 0.0
        %353 = vmatpush1.msra.mxu0 0.0
        %354 = vmatprep.subr.mxu0 0.0
        %355 = vmatpush1.msra.mxu0 0.0
        %356 = vmatprep.subr.mxu0 0.0
        %357 = vmatpush1.msra.mxu0 0.0
        %358 = vmatprep.subr.mxu0 0.0
        %359 = vmatpush1.msra.mxu0 0.0
        %360 = vmatprep.subr.mxu0 0.0
        %361 = vmatpush1.msra.mxu0 0.0
        %362 = vmatprep.subr.mxu0 0.0
        %363 = vmatpush1.msra.mxu0 0.0
        %364 = vmatprep.subr.mxu0 0.0
        %365 = vmatpush1.msra.mxu0 0.0
        %366 = vmatprep.subr.mxu0 0.0
        %367 = vmatpush1.msra.mxu0 0.0
        %368 = vmatprep.subr.mxu0 0.0
        %369 = vmatpush1.msra.mxu0 0.0
        %370 = vmatprep.subr.mxu0 0.0
        %371 = vmatpush1.msra.mxu0 0.0
        %372 = vmatprep.subr.mxu0 0.0
        %373 = vmatpush1.msra.mxu0 0.0
        %374 = vmatprep.subr.mxu0 0.0
        %375 = vmatpush1.msra.mxu0 0.0
        %376 = vmatprep.subr.mxu0 0.0
        %377 = vmatpush1.msra.mxu0 0.0
        %378 = vmatprep.subr.mxu0 0.0
        %379 = vmatpush1.msra.mxu0 0.0
        %380 = vmatprep.subr.mxu0 0.0
        %381 = vmatpush1.msra.mxu0 0.0
        %382 = vmatprep.subr.mxu0 0.0
        %383 = vmatpush1.msra.mxu0 0.0
        %384 = vmatprep.mubr.f32.mxu0 0.0
        %385 = vmatmul.mubr.f32.gmra.mrb[0].mxu0 %v240
        %v386 = vpop.f32.mrb[0].mxu0
        %v387 = vadd.f32 %v312, %v386
        %v388 = vpop.f32.mrb[0].mxu0
        %389 = vmatprep.mubr.f32.mxu0 0.0
        %390 = vmatmul.mubr.f32.gmra.mrb[0].mxu0 %v243
        %v391 = vpop.f32.mrb[0].mxu0
        %v392 = vadd.f32 %v317, %v391
        %v393 = vpop.f32.mrb[0].mxu0
        %394 = vdwg.mxu0
        %395 = vst [vmem:[%s184] sm:$0xff] %v387
        %396 = vst [vmem:[%s184 + $0x8] sm:$0xff] %v392
        %s397 = sand.u32 %s75, 1
        %s398 = scalar_lea.sflag [#allocation4], %s397
        %s399 = sand.u32 %s75, 1
        %s400 = smul.addr %s399, 16
        %s401 = scalar_lea.vmem [#allocation7], %s400
        // Predicated region
        $region37: #{tpu_custom_call.1} parent=27 // pred_check
          %p402 = pneg %p85
        $region38: #{tpu_custom_call.1} parent=27 // pred_check_branch
          %404 = sbr.rel (%p402) target = $region40
        $region39: #{tpu_custom_call.1} parent=27 // pred_region
          %s405 = smul.u32 2, %s20
          %s406 = ssub.s32 3, %s405
          %p407 = scmp.lt.s32.totalorder %s406, 2
          %s408 = scalar_select %p407, %s406, 2
          %s409 = smul.u32 128, %s408
          %s411 = ssub.s32 256, %s409
          %412 = vsyncadd %s398, %s411
          %p413 = scmp.ne.s32.totalorder 0, %s409
          %s414 = smul.addr %s405, 128
          %s415 = scalar_lea.hbm %s2, %s414
          %s416 = smul.u32 8, %s408
          %s417 = sshll.u32 %s401, 4
          %s418 = int_to_ptr.vmem [resolvable:$true] %s417
          %s419 = sshll.u32 %s416, 4
          %423 = dma.vmem_to_hbm [thread:$0]  (%p413), %s418, %s419, %s415, %s398, 128, 128, 8
        $region40: #{tpu_custom_call.1} parent=27 // pred_fallthru
          _
      $region28: #{tpu_custom_call.1} parent=5 // pred_fallthru
        _
      %p424 = scmp.le.s32.totalorder 2, %s15
      // Predicated region
      $region41: #{tpu_custom_call.1} parent=5 // pred_check
        %p425 = pneg %p424
      $region42: #{tpu_custom_call.1} parent=5 // pred_check_branch
        %427 = sbr.rel (%p425) target = $region44
      $region43: #{tpu_custom_call.1} parent=5 // pred_region
        %s428 = ssub.s32 %s15, 2
        // Predicated region
        $region45: #{tpu_custom_call.1} parent=43 // pred_check
          %p429 = pneg %p91
        $region46: #{tpu_custom_call.1} parent=43 // pred_check_branch
          %431 = sbr.rel (%p429) target = $region48
        $region47: #{tpu_custom_call.1} parent=43 // pred_region
          %s432 = sand.u32 %s76, 1
          %s433 = scalar_lea.sflag [#allocation4], %s432
          %s434 = sand.u32 %s76, 1
          %s435 = smul.addr %s434, 16
          %s436 = scalar_lea.vmem [#allocation7], %s435
          %437 = dma.done %s433, 256
        $region48: #{tpu_custom_call.1} parent=43 // pred_fallthru
          _
      $region44: #{tpu_custom_call.1} parent=5 // pred_fallthru
        _
    $region6: #{tpu_custom_call.1} parent=1 // loop_footer
      %s19 = sadd.s32 1, %s15
    $region7: #{tpu_custom_call.1} parent=1 // loop_footer_branch
      %14 = sbr.rel target = $region3
    $region8: #{tpu_custom_call.1} parent=1 // loop_exit
      _
    %438 = vsyncpa [#allocation3], 1
    %s439 = scalar_lea.sflag [#allocation3], 1
    %440 = vsyncpa %s439, 1
    %441 = vsyncpa [#allocation6], 1
    %442 = vsyncpa [#allocation4], 1
    %s443 = scalar_lea.sflag [#allocation4], 1
    %444 = vsyncpa %s443, 1

</llo_original>
